<compile_context>
chip_gen: v5e
topology: v5e:2x2
jax: 0.10.0
libtpu: 0.0.40
codegen_flags: <defaults>
</compile_context>

<pallas_src>
import functools

import jax
import jax.numpy as jnp
from jax.experimental import pallas as pl
from jax.experimental.pallas import tpu as pltpu


def _vmem_capacity_bytes():
    try:
        return int(pltpu.get_tpu_info().vmem_capacity_bytes)
    except Exception:
        return 64 * 1024 * 1024  # conservative fallback (v7x per-TC VMEM)


def _pick_tile_n(n, c, itemsize, vmem_limit_bytes):
    """Batch-tile size: target ~4 MiB native logits tiles, bounded by the real
    VMEM working set (double-buffered native tile + ~3 f32 copies in-kernel +
    lane-padded int32 target buffers), rounded to the sublane multiple of 8."""
    # Per-row VMEM bytes actually consumed:
    per_row = (2 * c * itemsize        # logits tile, double-buffered, native dtype
               + 3 * c * 4             # f32 upcast / exp temp / iota working set
               + 2 * 128 * 4)          # (tile_n, 1) int32 targets lane-pad to 128, x2 bufs
    budget = vmem_limit_bytes // 2     # headroom for output blocks / compiler temps
    rows_by_vmem = budget // max(1, per_row)
    rows_by_target = max(1024, (4 << 20) // max(1, c * itemsize))  # ~4 MiB tile goal
    tile = min(int(rows_by_vmem), int(rows_by_target))
    tile = max(8, (tile // 8) * 8)
    n_pad8 = -(-n // 8) * 8
    return max(8, min(tile, n_pad8))


def _focal_partial_kernel(x_ref, t_ref, o_ref, *, n_total, tile_n):
    """Per-tile partial sum of the per-sample cross-entropy (NLL)."""
    pid = pl.program_id(0)

    x = x_ref[...].astype(jnp.float32)            # (tile_n, C), upcast in-vreg
    t = t_ref[...]                                # (tile_n, 1) int32 targets

    # Numerically stable log-sum-exp along the class (lane) axis.
    m = jnp.max(x, axis=-1, keepdims=True)                         # (tile_n, 1)
    lse = jnp.log(jnp.sum(jnp.exp(x - m), axis=-1, keepdims=True))  # (tile_n, 1)

    # Gather x[target] with an iota mask (no dynamic gather); nll = m + lse - x_t.
    col = jax.lax.broadcasted_iota(jnp.int32, x.shape, 1)          # (tile_n, C)
    x_t = jnp.sum(jnp.where(col == t, x, 0.0), axis=-1, keepdims=True)
    nll = (m + lse) - x_t                                          # (tile_n, 1)

    # Mask rows past the true batch size (undefined data of the last,
    # non-dividing block).  Select discards any Inf/NaN from those rows.
    row = jax.lax.broadcasted_iota(jnp.int32, (tile_n, 1), 0) + pid * tile_n
    nll = jnp.where(row < n_total, nll, 0.0)

    partial = jnp.sum(nll)                                         # scalar
    # Lane-dense (8, 128) output block so stores are unmasked and the grid
    # axis can be "parallel"; every element carries the same partial sum.
    o_ref[...] = jnp.full(o_ref.shape, partial, dtype=jnp.float32)


def focal_loss(logits, targets, gamma=0.0, eps=1e-10):
    """logits: (N, C) float; targets: (N,) int class indices -> scalar f32.

    `eps` is accepted for API parity with the PyTorch module but adding a
    constant to every logit is a softmax shift-invariance no-op, so it is
    not applied (bit-compatible up to normal float rounding).
    """
    del eps
    n, c = logits.shape
    itemsize = jnp.dtype(logits.dtype).itemsize

    vmem_bytes = _vmem_capacity_bytes()
    vmem_limit = int(vmem_bytes * 3 // 4)          # 48 MiB on v7x, 96 MiB on v5e/v6e

    tile_n = _pick_tile_n(n, c, itemsize, vmem_limit)
    num_tiles = -(-n // tile_n)

    # Give v7x's second TensorCore work: guarantee >= 2 "parallel" grid steps
    # when the batch allows it (negligible overhead on single-TC parts).
    if num_tiles == 1 and tile_n > 8:
        tile_n = max(8, ((tile_n // 2 + 7) // 8) * 8)
        num_tiles = -(-n // tile_n)

    t2 = targets.reshape(n, 1).astype(jnp.int32)

    kernel = functools.partial(_focal_partial_kernel, n_total=n, tile_n=tile_n)

    cost = pl.CostEstimate(
        flops=5 * n * c,                  # max, sub, sum, compare/select, adds
        transcendentals=n * c,            # exp
        bytes_accessed=n * c * itemsize + n * 4 + num_tiles * 8 * 128 * 4,
    )

    partials = pl.pallas_call(
        kernel,
        out_shape=jax.ShapeDtypeStruct((num_tiles * 8, 128), jnp.float32),
        grid=(num_tiles,),
        in_specs=[
            pl.BlockSpec((tile_n, c), lambda i: (i, 0)),   # logits tile (non-dividing last block ok)
            pl.BlockSpec((tile_n, 1), lambda i: (i, 0)),   # target indices tile
        ],
        out_specs=pl.BlockSpec((8, 128), lambda i: (i, 0)),
        compiler_params=pltpu.CompilerParams(
            dimension_semantics=("parallel",),
            vmem_limit_bytes=vmem_limit,
        ),
        cost_estimate=cost,
    )(logits, t2)

    # Tiny final reduction + focal modulation in plain JAX (scalar math).
    per_tile = partials.reshape(num_tiles, 8, 128)[:, 0, 0]
    logp = jnp.sum(per_tile) / jnp.float32(n)      # CrossEntropy 'mean'
    p = jnp.exp(-logp)
    return jnp.power(1.0 - p, jnp.float32(gamma)) * logp


def _focal_loss_ref(logits, targets, gamma=0.0, eps=1e-10):
    # Pure-JAX reference mirroring the PyTorch module.
    x = logits.astype(jnp.float32) + eps
    logsm = jax.nn.log_softmax(x, axis=-1)
    nll = -jnp.take_along_axis(logsm, targets[:, None].astype(jnp.int32),
                               axis=-1)[:, 0]
    logp = jnp.mean(nll)
    p = jnp.exp(-logp)
    return jnp.power(1.0 - p, jnp.float32(gamma)) * logp


if __name__ == "__main__":
    key = jax.random.PRNGKey(0)
    gamma = 2.0
    k1, k2, k3, k4, k5, k6 = jax.random.split(key, 6)

    # Case 1: tiny tile-aligned batch (single 8-row tile).
    N1, C1 = 8, 32
    logits1 = jax.random.normal(k1, (N1, C1), dtype=jnp.float32)
    targets1 = jax.random.randint(k2, (N1,), 0, C1, dtype=jnp.int32)
    out1 = jax.block_until_ready(focal_loss(logits1, targets1, gamma=gamma))
    ref1 = _focal_loss_ref(logits1, targets1, gamma=gamma)
    assert jnp.allclose(out1, ref1, rtol=1e-5, atol=1e-6), (out1, ref1)

    # Case 2: N % tile != 0 -> exercises the unpadded, non-dividing last block
    # (undefined tail rows masked in-kernel) plus the >= 2-tile split.
    N2, C2 = 13, 40
    logits2 = jax.random.normal(k3, (N2, C2), dtype=jnp.float32)
    targets2 = jax.random.randint(k4, (N2,), 0, C2, dtype=jnp.int32)
    out2 = jax.block_until_ready(focal_loss(logits2, targets2, gamma=gamma))
    ref2 = _focal_loss_ref(logits2, targets2, gamma=gamma)
    assert jnp.allclose(out2, ref2, rtol=1e-5, atol=1e-6), (out2, ref2)

    # Case 3: multi-tile bf16 input (native-dtype DMA, in-vreg f32 upcast).
    N3, C3 = 100, 48
    logits3 = jax.random.normal(k5, (N3, C3), dtype=jnp.float32).astype(jnp.bfloat16)
    targets3 = jax.random.randint(k6, (N3,), 0, C3, dtype=jnp.int32)
    out3 = jax.block_until_ready(focal_loss(logits3, targets3, gamma=gamma))
    ref3 = _focal_loss_ref(logits3, targets3, gamma=gamma)
    assert jnp.allclose(out3, ref3, rtol=1e-4, atol=1e-5), (out3, ref3)

    print("KERNEL_OK")
</pallas_src>

<mosaic_0001>
module attributes {stable_mosaic.version = 11 : i64} {
  func.func @_focal_partial_kernel(%arg0: i32, %arg1: memref<8x32xf32, #tpu.memory_space<vmem>>, %arg2: memref<8x1xi32, #tpu.memory_space<vmem>>, %arg3: memref<8x128xf32, #tpu.memory_space<vmem>>) attributes {dimension_semantics = [#tpu.dimension_semantics<parallel>], iteration_bounds = array<i64: 1>, scalar_prefetch = 0 : i64, scratch_operands = 0 : i64, tpu.core_type = #tpu.core_type<tc>, window_params = [{transform_indices = @transform_0, window_bounds = array<i64: 8, 32>}, {transform_indices = @transform_1, window_bounds = array<i64: 8, 1>}, {transform_indices = @transform_2, window_bounds = array<i64: 8, 128>}]} {
    %c0 = arith.constant 0 : index
    %c0_0 = arith.constant 0 : index
    %0 = vector.load %arg1[%c0, %c0_0] : memref<8x32xf32, #tpu.memory_space<vmem>>, vector<8x32xf32>
    %c0_1 = arith.constant 0 : index
    %c0_2 = arith.constant 0 : index
    %1 = vector.load %arg2[%c0_1, %c0_2] : memref<8x1xi32, #tpu.memory_space<vmem>>, vector<8x1xi32>
    %cst = arith.constant dense<0xFF800000> : vector<8xf32>
    %2 = vector.multi_reduction <maximumf>, %0, %cst [1] : vector<8x32xf32> to vector<8xf32>
    %3 = vector.shape_cast %2 : vector<8xf32> to vector<8x1xf32>
    %4 = vector.broadcast %3 : vector<8x1xf32> to vector<8x32xf32>
    %5 = arith.subf %0, %4 : vector<8x32xf32>
    %6 = math.exp %5 : vector<8x32xf32>
    %cst_3 = arith.constant dense<0.000000e+00> : vector<8xf32>
    %7 = vector.multi_reduction <add>, %6, %cst_3 [1] : vector<8x32xf32> to vector<8xf32>
    %8 = vector.shape_cast %7 : vector<8xf32> to vector<8x1xf32>
    %9 = math.log %8 : vector<8x1xf32>
    %10 = tpu.iota {dimensions = array<i32: 1>} : vector<8x32xi32>
    %11 = vector.broadcast %1 : vector<8x1xi32> to vector<8x32xi32>
    %12 = arith.cmpi eq, %10, %11 : vector<8x32xi32>
    %cst_4 = arith.constant 0.000000e+00 : f32
    %13 = vector.broadcast %cst_4 : f32 to vector<8x32xf32>
    %14 = arith.select %12, %0, %13 : vector<8x32xi1>, vector<8x32xf32>
    %cst_5 = arith.constant dense<0.000000e+00> : vector<8xf32>
    %15 = vector.multi_reduction <add>, %14, %cst_5 [1] : vector<8x32xf32> to vector<8xf32>
    %16 = vector.shape_cast %15 : vector<8xf32> to vector<8x1xf32>
    %17 = arith.addf %3, %9 : vector<8x1xf32>
    %18 = arith.subf %17, %16 : vector<8x1xf32>
    %19 = tpu.iota {dimensions = array<i32: 0>} : vector<8x1xi32>
    %c8_i32 = arith.constant 8 : i32
    %20 = arith.muli %arg0, %c8_i32 : i32
    %21 = vector.broadcast %20 : i32 to vector<8x1xi32>
    %22 = arith.addi %19, %21 : vector<8x1xi32>
    %c8_i32_6 = arith.constant 8 : i32
    %23 = vector.broadcast %c8_i32_6 : i32 to vector<8x1xi32>
    %24 = arith.cmpi slt, %22, %23 : vector<8x1xi32>
    %cst_7 = arith.constant 0.000000e+00 : f32
    %25 = vector.broadcast %cst_7 : f32 to vector<8x1xf32>
    %26 = arith.select %24, %18, %25 : vector<8x1xi1>, vector<8x1xf32>
    %27 = vector.shape_cast %26 : vector<8x1xf32> to vector<1x8x1xf32>
    %cst_8 = arith.constant dense<0.000000e+00> : vector<1xf32>
    %28 = vector.multi_reduction <add>, %27, %cst_8 [1, 2] : vector<1x8x1xf32> to vector<1xf32>
    %29 = vector.shape_cast %28 : vector<1xf32> to vector<1x1x1xf32>
    %30 = vector.extract %29[0, 0, 0] : f32 from vector<1x1x1xf32>
    %31 = vector.broadcast %30 : f32 to vector<8x128xf32>
    %c0_9 = arith.constant 0 : index
    %c0_10 = arith.constant 0 : index
    %32 = vector.load %arg3[%c0_9, %c0_10] : memref<8x128xf32, #tpu.memory_space<vmem>>, vector<8x128xf32>
    tpu.vector_store %arg3[%c0_9, %c0_10], %31 {strides = array<i32>} : memref<8x128xf32, #tpu.memory_space<vmem>>, vector<8x128xf32>,
    return
  }
  func.func @transform_0(%arg0: i32) -> (i32, i32) {
    %c0_i32 = arith.constant 0 : i32
    %c0_i32_0 = arith.constant 0 : i32
    return %arg0, %c0_i32 : i32, i32
  }
  func.func @transform_1(%arg0: i32) -> (i32, i32) {
    %c0_i32 = arith.constant 0 : i32
    %c0_i32_0 = arith.constant 0 : i32
    return %arg0, %c0_i32 : i32, i32
  }
  func.func @transform_2(%arg0: i32) -> (i32, i32) {
    %c0_i32 = arith.constant 0 : i32
    %c0_i32_0 = arith.constant 0 : i32
    return %arg0, %c0_i32 : i32, i32
  }
}

</mosaic_0001>

<llo_original>
// kernel: tpu_custom_call.1
$region0: #{tpu_custom_call.1}
  #allocation0 [shape = 'u32[]', space=smem, size = 0x4, offset = 0x4, fixed_abs, tag = 'smem constant byte address 0x4 - core index']
  #allocation1 [shape = 'u32[72,128]{1,0:T(1,128)}', space=vmem, size = 0x9000, scoped, tag = 'internal scratch']
  %s0 = inlined_call_operand.vmem [shape: f32[8,32], index: 0, kind: input, shape index: {}]
  %s1 = inlined_call_operand.vmem [shape: s32[8,1], index: 1, kind: input, shape index: {}]
  %s2 = inlined_call_operand.hbm [shape: f32[8,128], index: 2, kind: output, shape index: {}]
  %s3 = sld [smem:[#allocation0]]
  $region18: #{tpu_custom_call.1} parent=0
    _
  %s5 = ssub.s32 1, %s3
  %s6 = scalar_select 0, %s5, %s3
  $region1: #{tpu_custom_call.1} parent=0
    #allocation2 [shape = 'u8[4096]{0}', space=vmem, size = 0x1000, scoped, tag = 'output window, operand 0, single buffered']
    #allocation3 [shape = 's32[1]{0}', space=sflag, size = 0x4, scoped, tag = 'scoped memory for tpu_custom_call.1']
    %7 = vsyncpa [#allocation3], 0
    // Predicated region
    $region2: #{tpu_custom_call.1} parent=1 // pred_check
      _
    $region3: #{tpu_custom_call.1} parent=1 // pred_check_branch
      %9 = sbr.rel (0) target = $region5
    $region4: #{tpu_custom_call.1} parent=1 // pred_region
      _
    $region5: #{tpu_custom_call.1} parent=1 // pred_fallthru
      _
    // Predicated region
    $region6: #{tpu_custom_call.1} parent=1 // pred_check
      _
    $region7: #{tpu_custom_call.1} parent=1 // pred_check_branch
      %11 = sbr.rel (0) target = $region9
    $region8: #{tpu_custom_call.1} parent=1 // pred_region
      _
    $region9: #{tpu_custom_call.1} parent=1 // pred_fallthru
      _
    %v12 = vld [vmem:[%s0] sm:$0xff]
    %v13 = vld [vmem:[%s1] sm:$0xff]
    %vm14 = vcmask 261120
    %v15 = vsel %vm14, %v12, -inf
    %16 = vmax.xlane.f32.xlu0 %v15
    %v17 = vpop.xlane.xlu0 %16
    %v18 = vsub.f32 %v12, %v17
    %v19 = vmul.f32 %v18, 1.442695
    %v20 = vpow.pop %v19
    %v21 = vsel %vm14, %v20, 0.0
    %22 = vadd.xlane.f32.xlu0 %v21
    %v23 = vpop.xlane.xlu0 %22
    %v24 = vlog2.pop %v23
    %v25 = vmul.f32 %v24, 0.6931472
    %v26 = vlaneseq
    %v27 = vand.u32 %v26, 127
    %28 = vset.pattern.permute.xlu0 0
    %29 = vperm.xlu0 %28, %v13
    %v30 = vpop.permute.xlu0 %29
    %vm31 = vcmp.eq.s32.totalorder %v27, %v30
    %v32 = vsel %vm31, %v12, 0.0
    %v33 = vsel %vm14, %v32, 0.0
    %34 = vadd.xlane.f32.xlu0 %v33
    %v35 = vpop.xlane.xlu0 %34
    %v36 = vadd.f32 %v17, %v25
    %v37 = vsub.f32 %v36, %v35
    %v38 = vlaneseq
    %v39 = vshrl.u32 %v38, 7
    %s40 = smul.u32 0, 8
    %v41 = vstv %s40
    %v42 = vadd.s32 %v39, %v41
    %vm43 = vcmp.lt.s32.totalorder %v42, 8
    %v44 = vsel %vm43, %v37, 0.0
    %vm45 = vcmask 7168
    %v46 = vsel %vm45, %v44, 0.0
    %47 = vadd.xlane.f32.xlu0 %v46
    %v48 = vpop.xlane.xlu0 %47
    %v49 = vrot.slane %v48, 4
    %v50 = vadd.f32 %v48, %v49
    %v51 = vrot.slane %v50, 2
    %v52 = vadd.f32 %v50, %v51
    %v53 = vrot.slane %v52, 1
    %v54 = vadd.f32 %v52, %v53
    %s55 = vtos %v54
    %v56 = vstv %s55
    %57 = vst [vmem:[#allocation2] sm:$0xff] %v56
    // Predicated region
    $region10: #{tpu_custom_call.1} parent=1 // pred_check
      _
    $region11: #{tpu_custom_call.1} parent=1 // pred_check_branch
      %59 = sbr.rel (0) target = $region13
    $region12: #{tpu_custom_call.1} parent=1 // pred_region
      %61 = vsyncadd [#allocation3], 0
      %s63 = sshll.u32 [#allocation2], 4
      %s64 = int_to_ptr.vmem [resolvable:$true] %s63
      %s65 = sshll.u32 %s2, 4
      %s66 = int_to_ptr.hbm [resolvable:$true] %s65
      %68 = dma.vmem_to_hbm [thread:$0]  %s64, 128, %s66, [#allocation3]
    $region13: #{tpu_custom_call.1} parent=1 // pred_fallthru
      _
    // Predicated region
    $region14: #{tpu_custom_call.1} parent=1 // pred_check
      _
    $region15: #{tpu_custom_call.1} parent=1 // pred_check_branch
      %70 = sbr.rel (0) target = $region17
    $region16: #{tpu_custom_call.1} parent=1 // pred_region
      %72 = dma.done [#allocation3], 128
    $region17: #{tpu_custom_call.1} parent=1 // pred_fallthru
      _
    %73 = vsyncpa [#allocation3], 1

</llo_original>
